<compile_context>
chip_gen: v6e
topology: v6e:2x2x1
jax: 0.10.0
libtpu: 0.0.40
codegen_flags: <defaults>
</compile_context>

<pallas_src>
import functools
import math

import jax
import jax.numpy as jnp
from jax.experimental import pallas as pl
from jax.experimental.pallas import tpu as pltpu

DROPOUT_P = 0.2  # module-level `dropout = 0.2` in the source file


def make_positional_encoding(d_model: int, max_len: int = 5000,
                             dtype=jnp.float32):
    """Deterministic replication of the PyTorch __init__ buffer `pe`."""
    position = jnp.arange(max_len, dtype=jnp.float32)[:, None]          # (L, 1)
    div_term = jnp.exp(
        jnp.arange(0, d_model, 2, dtype=jnp.float32)
        * (-math.log(10000.0) / d_model))                               # (D/2,)
    pe = jnp.zeros((max_len, 1, d_model), dtype)
    pe = pe.at[:, 0, 0::2].set(jnp.sin(position * div_term).astype(dtype))
    pe = pe.at[:, 0, 1::2].set(jnp.cos(position * div_term).astype(dtype))
    return pe                                                            # (L, 1, D)


# ----------------------------- kernels --------------------------------------

def _pe_add_kernel(x_ref, pe_ref, o_ref, *, batch: int):
    # x_ref: (TS, B*D), pe_ref: (TS, D).  Broadcast pe across the batch by
    # tiling along the lane axis:  out[s, b*D + d] = x[s, b*D + d] + pe[s, d].
    pe_full = jnp.tile(pe_ref[...], (1, batch)).astype(x_ref.dtype)
    o_ref[...] = x_ref[...] + pe_full


def _pe_add_dropout_kernel(x_ref, pe_ref, bits_ref, o_ref, *, batch: int,
                           p: float):
    pe_full = jnp.tile(pe_ref[...], (1, batch)).astype(x_ref.dtype)
    y = x_ref[...] + pe_full
    # Keep iff bits >= p * 2^32.  int() truncation shifts the keep probability
    # from (1-p) by ~2e-10 -- negligible.
    thresh = jnp.uint32(int(p * 4294967296.0))
    keep = bits_ref[...] >= thresh
    # Stay in the storage dtype; 1/(1-p) is a compile-time constant (weak type).
    o_ref[...] = jnp.where(keep, y * (1.0 / (1.0 - p)), jnp.zeros_like(y))


# ----------------------------- wrapper ---------------------------------------

def _choose_seq_tile(seq_len: int, row_bytes: int,
                     target_bytes: int = 4 * 1024 * 1024) -> int:
    """Seq-tile rows so one x tile is ~4 MiB (double-buffered inputs + outputs
    stay well under v7x's 64 MiB VMEM and the default scoped limit)."""
    ts = min(seq_len, max(8, target_bytes // max(row_bytes, 1)))
    if ts < seq_len:
        ts = max(8, (ts // 8) * 8)      # keep second-minor dim 8-aligned
    return ts


def positional_encoding_forward(x, pe, *, p: float = DROPOUT_P,
                                training: bool = False, key=None):
    """x: (seq, batch, d_model); pe: (max_len, 1, d_model)."""
    S, B, D = x.shape
    x2 = x.reshape(S, B * D)                 # free row-major view, lane-dense
    pe2 = pe.reshape(pe.shape[0], D)         # (max_len, D), squeeze size-1 dim

    row_bytes = B * D * x.dtype.itemsize
    TS = _choose_seq_tile(S, row_bytes)
    grid = (pl.cdiv(S, TS),)

    x_spec = pl.BlockSpec((TS, B * D), lambda i: (i, 0))
    pe_spec = pl.BlockSpec((TS, D), lambda i: (i, 0))
    out_spec = pl.BlockSpec((TS, B * D), lambda i: (i, 0))

    cparams = pltpu.CompilerParams(dimension_semantics=("parallel",))

    if training and p > 0.0:
        if key is None:
            key = jax.random.PRNGKey(0)
        # TODO(synk): on real TPU hardware, generate the mask in-kernel with
        # pltpu.prng_seed(seed + pl.program_id(0)) + pltpu.prng_random_bits to
        # avoid this extra HBM stream; those primitives have no CPU/interpret
        # lowering, so bits are precomputed here for portability.
        bits = jax.random.bits(key, (S, B * D), dtype=jnp.uint32)
        kernel = functools.partial(_pe_add_dropout_kernel, batch=B, p=float(p))
        out2 = pl.pallas_call(
            kernel,
            out_shape=jax.ShapeDtypeStruct((S, B * D), x.dtype),
            grid=grid,
            in_specs=[x_spec, pe_spec,
                      pl.BlockSpec((TS, B * D), lambda i: (i, 0))],
            out_specs=out_spec,
            compiler_params=cparams,
        )(x2, pe2, bits)
    else:
        kernel = functools.partial(_pe_add_kernel, batch=B)
        out2 = pl.pallas_call(
            kernel,
            out_shape=jax.ShapeDtypeStruct((S, B * D), x.dtype),
            grid=grid,
            in_specs=[x_spec, pe_spec],
            out_specs=out_spec,
            compiler_params=cparams,
        )(x2, pe2)

    return out2.reshape(S, B, D)


# ----------------------------- demo / check ----------------------------------

if __name__ == "__main__":
    seq_len, batch, d_model = 8, 2, 32
    key = jax.random.PRNGKey(0)
    kx, kd = jax.random.split(key)
    x = jax.random.normal(kx, (seq_len, batch, d_model), dtype=jnp.float32)

    pe = make_positional_encoding(d_model)          # (5000, 1, 32)

    # Eval-mode forward (dropout is identity): exact PyTorch semantics.
    out_eval = jax.block_until_ready(
        positional_encoding_forward(x, pe, training=False))
    ref = x + pe[:seq_len]                          # pure-JAX reference
    assert out_eval.shape == x.shape and out_eval.dtype == x.dtype
    assert jnp.allclose(out_eval, ref, atol=1e-6), "eval-mode mismatch"

    # Training-mode forward (inverted dropout, p=0.2).
    out_train = jax.block_until_ready(
        positional_encoding_forward(x, pe, training=True, key=kd))
    kept = out_train != 0.0
    assert jnp.allclose(jnp.where(kept, out_train, 0.0),
                        jnp.where(kept, ref / (1.0 - DROPOUT_P), 0.0),
                        atol=1e-5), "train-mode scaling mismatch"

    print("KERNEL_OK")
</pallas_src>

<mosaic_0001>
module attributes {stable_mosaic.version = 11 : i64} {
  func.func @_pe_add_kernel(%arg0: i32, %arg1: memref<8x64xf32, #tpu.memory_space<vmem>>, %arg2: memref<8x32xf32, #tpu.memory_space<vmem>>, %arg3: memref<8x64xf32, #tpu.memory_space<vmem>>) attributes {dimension_semantics = [#tpu.dimension_semantics<parallel>], iteration_bounds = array<i64: 1>, scalar_prefetch = 0 : i64, scratch_operands = 0 : i64, tpu.core_type = #tpu.core_type<tc>, window_params = [{transform_indices = @transform_0, window_bounds = array<i64: 8, 64>}, {transform_indices = @transform_1, window_bounds = array<i64: 8, 32>}, {transform_indices = @transform_2, window_bounds = array<i64: 8, 64>}]} {
    %c0 = arith.constant 0 : index
    %c0_0 = arith.constant 0 : index
    %0 = vector.load %arg2[%c0, %c0_0] : memref<8x32xf32, #tpu.memory_space<vmem>>, vector<8x32xf32>
    %1 = tpu.concatenate %0, %0 in 1 : vector<8x32xf32>, vector<8x32xf32> -> vector<8x64xf32>
    %c0_1 = arith.constant 0 : index
    %c0_2 = arith.constant 0 : index
    %2 = vector.load %arg1[%c0_1, %c0_2] : memref<8x64xf32, #tpu.memory_space<vmem>>, vector<8x64xf32>
    %3 = arith.addf %2, %1 : vector<8x64xf32>
    %c0_3 = arith.constant 0 : index
    %c0_4 = arith.constant 0 : index
    %4 = vector.load %arg3[%c0_3, %c0_4] : memref<8x64xf32, #tpu.memory_space<vmem>>, vector<8x64xf32>
    tpu.vector_store %arg3[%c0_3, %c0_4], %3 {strides = array<i32>} : memref<8x64xf32, #tpu.memory_space<vmem>>, vector<8x64xf32>,
    return
  }
  func.func @transform_0(%arg0: i32) -> (i32, i32) {
    %c0_i32 = arith.constant 0 : i32
    %c0_i32_0 = arith.constant 0 : i32
    return %arg0, %c0_i32 : i32, i32
  }
  func.func @transform_1(%arg0: i32) -> (i32, i32) {
    %c0_i32 = arith.constant 0 : i32
    %c0_i32_0 = arith.constant 0 : i32
    return %arg0, %c0_i32 : i32, i32
  }
  func.func @transform_2(%arg0: i32) -> (i32, i32) {
    %c0_i32 = arith.constant 0 : i32
    %c0_i32_0 = arith.constant 0 : i32
    return %arg0, %c0_i32 : i32, i32
  }
}

</mosaic_0001>

<llo_original>
// kernel: tpu_custom_call.1
$region0: #{tpu_custom_call.1}
  #allocation0 [shape = 'u32[]', space=smem, size = 0x4, offset = 0x4, fixed_abs, tag = 'smem constant byte address 0x4 - core index']
  #allocation1 [shape = 'u32[144,128]{1,0:T(1,128)}', space=vmem, size = 0x12000, scoped, tag = 'internal scratch']
  %s0 = inlined_call_operand.vmem [shape: f32[8,64], index: 0, kind: input, shape index: {}]
  %s1 = inlined_call_operand.vmem [shape: f32[5000,32], index: 1, kind: input, shape index: {}]
  %s2 = inlined_call_operand.hbm [shape: f32[8,64], index: 2, kind: output, shape index: {}]
  %s3 = sld [smem:[#allocation0]]
  $region18: #{tpu_custom_call.1} parent=0
    _
  %s5 = ssub.s32 1, %s3
  %s6 = scalar_select 0, %s5, %s3
  $region1: #{tpu_custom_call.1} parent=0
    #allocation2 [shape = 'u8[4096]{0}', space=vmem, size = 0x1000, scoped, tag = 'output window, operand 0, single buffered']
    #allocation3 [shape = 's32[1]{0}', space=sflag, size = 0x4, scoped, tag = 'scoped memory for tpu_custom_call.1']
    %7 = vsyncpa [#allocation3], 0
    // Predicated region
    $region2: #{tpu_custom_call.1} parent=1 // pred_check
      _
    $region3: #{tpu_custom_call.1} parent=1 // pred_check_branch
      %9 = sbr.rel (0) target = $region5
    $region4: #{tpu_custom_call.1} parent=1 // pred_region
      _
    $region5: #{tpu_custom_call.1} parent=1 // pred_fallthru
      _
    // Predicated region
    $region6: #{tpu_custom_call.1} parent=1 // pred_check
      _
    $region7: #{tpu_custom_call.1} parent=1 // pred_check_branch
      %11 = sbr.rel (0) target = $region9
    $region8: #{tpu_custom_call.1} parent=1 // pred_region
      _
    $region9: #{tpu_custom_call.1} parent=1 // pred_fallthru
      _
    %v12 = vld [vmem:[%s1] sm:$0xff]
    %14 = vrot.lane.b32.xlu0 %v12, 32
    %v15 = vpop.permute.xlu0 %14
    %vm17 = vcmask 261120
    %v18 = vsel %vm17, %v12, %v15
    %v19 = vld [vmem:[%s0] sm:$0xff]
    %v20 = vadd.f32 %v19, %v18
    %vm21 = vcmask 523264
    %22 = vst.msk [vmem:[#allocation2] sm:$0xff] %vm21, %v20
    // Predicated region
    $region10: #{tpu_custom_call.1} parent=1 // pred_check
      _
    $region11: #{tpu_custom_call.1} parent=1 // pred_check_branch
      %24 = sbr.rel (0) target = $region13
    $region12: #{tpu_custom_call.1} parent=1 // pred_region
      %s26 = ssub.s32 128, 128
      %27 = vsyncadd [#allocation3], %s26
      %s29 = sshll.u32 [#allocation2], 4
      %s30 = int_to_ptr.vmem [resolvable:$true] %s29
      %32 = dma.vmem_to_hbm [thread:$0]  %s30, 128, %s2, [#allocation3]
    $region13: #{tpu_custom_call.1} parent=1 // pred_fallthru
      _
    // Predicated region
    $region14: #{tpu_custom_call.1} parent=1 // pred_check
      _
    $region15: #{tpu_custom_call.1} parent=1 // pred_check_branch
      %34 = sbr.rel (0) target = $region17
    $region16: #{tpu_custom_call.1} parent=1 // pred_region
      %35 = dma.done [#allocation3], 128
    $region17: #{tpu_custom_call.1} parent=1 // pred_fallthru
      _
    %36 = vsyncpa [#allocation3], 1

</llo_original>
